<compile_context>
chip_gen: v7x
topology: tpu7x:2x2x1
jax: 0.10.0
libtpu: 0.0.40
codegen_flags: <defaults>
</compile_context>

<pallas_src>
import functools

import numpy as np
import jax
import jax.numpy as jnp
from jax.experimental import pallas as pl
from jax.experimental.pallas import tpu as pltpu

LANE = 128                        # lane width (last dim)
TM_MAX = 2048                     # rows/step: 2048*128*4B = 1 MiB per f32 input buffer
VMEM_LIMIT = 48 * 1024 * 1024     # 2 inputs x 2 bufs + f32 temporaries; < v7x 64 MiB


def _sublane_align(dtype) -> int:
    # Minimum sublane multiple for a packed dtype: f32/i32 -> 8, bf16 -> 16, i8/bool -> 32.
    return {4: 8, 2: 16, 1: 32}.get(jnp.dtype(dtype).itemsize, 8)


def _round_up(a: int, m: int) -> int:
    return ((a + m - 1) // m) * m


def _fit_log1p_exp_neg(deg: int = 10, num: int = 512):
    """Power-basis polynomial for f(z) = log1p(exp(-z)) on z in [0, 1]."""
    k = np.arange(num)
    z = 0.5 * (1.0 - np.cos((k + 0.5) * np.pi / num))     # Chebyshev-distributed nodes
    c = np.polynomial.polynomial.polyfit(z, np.log1p(np.exp(-z)), deg)  # lowest first
    zz = np.linspace(0.0, 1.0, 4001)
    err = float(np.max(np.abs(np.polynomial.polynomial.polyval(zz, c)
                              - np.log1p(np.exp(-zz)))))
    assert err < 1e-7, err
    return tuple(float(v) for v in c)


_LOG1P_EXP_NEG_COEFFS = _fit_log1p_exp_neg()


def _log1p_exp_neg(z):
    """log1p(exp(-z)) for z in (0,1) via Horner polynomial (pure VPU FMAs, 0 EUP ops)."""
    c = _LOG1P_EXP_NEG_COEFFS
    acc = jnp.float32(c[-1])
    for v in c[-2::-1]:
        acc = acc * z + jnp.float32(v)
    return acc


def _fold_to_8x128(v, tm):
    """(tm, LANE) f32 -> (8, LANE) partial sums via vreg-aligned adds (no reshape)."""
    acc = v[0:8, :]
    for j in range(1, tm // 8):
        acc = acc + v[j * 8:(j + 1) * 8, :]
    return acc


def _focal_partial_kernel(x_ref, t_ref, o_ref, *, tm, rows_valid, ragged):
    """Per-block elementwise BCE + reduction to a lane-dense (8, 128) partial sum."""
    x = x_ref[...].astype(jnp.float32)
    t = t_ref[...].astype(jnp.float32)

    # Module semantics (kept exactly): BCE-with-logits applied to z = sigmoid(x).
    # Since z in (0,1): max(z,0) - z*t + log1p(exp(-|z|)) == z*(1-t) + log1p(exp(-z)).
    z = 0.5 * (jnp.tanh(0.5 * x) + 1.0)           # sigmoid via a single EUP op (tanh)
    bce = z * (1.0 - t) + _log1p_exp_neg(z)       # polynomial: no extra EUP ops

    if ragged:
        i = pl.program_id(0)
        last = pl.num_programs(0) - 1

        @pl.when(i != last)
        def _():
            o_ref[...] = _fold_to_8x128(bce, tm)

        @pl.when(i == last)
        def _():
            # Zero rows past the end of the array.  Row index (not element index)
            # so int32 is safe for any practical n (rows = n / 128).
            row = jax.lax.broadcasted_iota(jnp.int32, (tm, LANE), 0)
            masked = jnp.where(i * tm + row < rows_valid, bce, 0.0)
            o_ref[...] = _fold_to_8x128(masked, tm)
    else:
        o_ref[...] = _fold_to_8x128(bce, tm)


def focal_loss(inputs, targets, alpha=0.8, gamma=2.0):
    x = inputs.reshape(-1)       # native dtypes; cast to f32 happens in-kernel
    t = targets.reshape(-1)
    n = x.shape[0]

    main = (n // LANE) * LANE    # lane-aligned prefix streamed by the kernel
    rows = main // LANE
    align = max(_sublane_align(x.dtype), _sublane_align(t.dtype))

    total = jnp.float32(0.0)
    rem_start = 0
    if rows >= align:
        # No padding: reshape of the contiguous prefix is a bitcast.
        x2 = x[:main].reshape(rows, LANE)
        t2 = t[:main].reshape(rows, LANE)

        tm = min(TM_MAX, _round_up(rows, align))
        if rows >= 2 * align:
            # Keep >= 2 blocks so the "parallel" axis can split across both
            # TensorCores on v7x (megacore).
            tm = min(tm, _round_up((rows + 1) // 2, align))
        num_blocks = (rows + tm - 1) // tm
        ragged = (rows % tm) != 0

        kernel = functools.partial(_focal_partial_kernel, tm=tm,
                                   rows_valid=rows, ragged=ragged)
        partials = pl.pallas_call(
            kernel,
            out_shape=jax.ShapeDtypeStruct((num_blocks * 8, LANE), jnp.float32),
            grid_spec=pltpu.PrefetchScalarGridSpec(
                num_scalar_prefetch=0,
                grid=(num_blocks,),
                in_specs=[
                    pl.BlockSpec((tm, LANE), lambda i: (i, 0)),
                    pl.BlockSpec((tm, LANE), lambda i: (i, 0)),
                ],
                out_specs=pl.BlockSpec((8, LANE), lambda i: (i, 0)),
            ),
            compiler_params=pltpu.CompilerParams(
                dimension_semantics=("parallel",),
                vmem_limit_bytes=VMEM_LIMIT,
            ),
        )(x2, t2)
        total = total + jnp.sum(partials)
        rem_start = main

    if rem_start < n:
        # <128-element ragged tail (or tiny-input fallback) in plain JAX.
        xt = x[rem_start:].astype(jnp.float32)
        tt = t[rem_start:].astype(jnp.float32)
        zt = jax.nn.sigmoid(xt)
        total = total + jnp.sum(zt * (1.0 - tt) + jnp.log1p(jnp.exp(-zt)))

    # Tiny scalar epilogue: final mean + focal transform.
    mean_bce = total / jnp.float32(n)
    bce_exp = jnp.exp(-mean_bce)
    return alpha * (1.0 - bce_exp) ** gamma * mean_bce


def focal_loss_ref(inputs, targets, alpha=0.8, gamma=2.0):
    x = inputs.reshape(-1).astype(jnp.float32)
    t = targets.reshape(-1).astype(jnp.float32)
    z = jax.nn.sigmoid(x)
    # Canonical BCE-with-logits applied to sigmoid(x), as the PyTorch module does.
    bce = jnp.mean(jnp.maximum(z, 0.0) - z * t + jnp.log1p(jnp.exp(-jnp.abs(z))))
    bce_exp = jnp.exp(-bce)
    return alpha * (1.0 - bce_exp) ** gamma * bce


if __name__ == "__main__":
    key = jax.random.PRNGKey(0)
    k1, k2 = jax.random.split(key)
    # NCHW-style logits and binary targets, matching the PyTorch usage.
    inputs = jax.random.normal(k1, (2, 4, 16, 16), dtype=jnp.float32)
    targets = (jax.random.uniform(k2, (2, 4, 16, 16)) > 0.5).astype(jnp.float32)

    loss = focal_loss(inputs, targets)
    loss = jax.block_until_ready(loss)

    ref = focal_loss_ref(inputs, targets)
    assert jnp.allclose(loss, ref, rtol=1e-4, atol=1e-6), (loss, ref)
    print("KERNEL_OK")
</pallas_src>

<mosaic_0001>
module attributes {stable_mosaic.version = 11 : i64} {
  func.func @_focal_partial_kernel(%arg0: i32, %arg1: memref<8x128xf32, #tpu.memory_space<vmem>>, %arg2: memref<8x128xf32, #tpu.memory_space<vmem>>, %arg3: memref<8x128xf32, #tpu.memory_space<vmem>>) attributes {dimension_semantics = [#tpu.dimension_semantics<parallel>], iteration_bounds = array<i64: 2>, scalar_prefetch = 0 : i64, scratch_operands = 0 : i64, tpu.core_type = #tpu.core_type<tc>, window_params = [{transform_indices = @transform_0, window_bounds = array<i64: 8, 128>}, {transform_indices = @transform_1, window_bounds = array<i64: 8, 128>}, {transform_indices = @transform_2, window_bounds = array<i64: 8, 128>}]} {
    %c0 = arith.constant 0 : index
    %c0_0 = arith.constant 0 : index
    %0 = vector.load %arg1[%c0, %c0_0] : memref<8x128xf32, #tpu.memory_space<vmem>>, vector<8x128xf32>
    %c0_1 = arith.constant 0 : index
    %c0_2 = arith.constant 0 : index
    %1 = vector.load %arg2[%c0_1, %c0_2] : memref<8x128xf32, #tpu.memory_space<vmem>>, vector<8x128xf32>
    %cst = arith.constant 5.000000e-01 : f32
    %2 = vector.broadcast %cst : f32 to vector<8x128xf32>
    %3 = arith.mulf %2, %0 : vector<8x128xf32>
    %4 = math.tanh %3 : vector<8x128xf32>
    %cst_3 = arith.constant 1.000000e+00 : f32
    %5 = vector.broadcast %cst_3 : f32 to vector<8x128xf32>
    %6 = arith.addf %4, %5 : vector<8x128xf32>
    %cst_4 = arith.constant 5.000000e-01 : f32
    %7 = vector.broadcast %cst_4 : f32 to vector<8x128xf32>
    %8 = arith.mulf %7, %6 : vector<8x128xf32>
    %cst_5 = arith.constant 1.000000e+00 : f32
    %9 = vector.broadcast %cst_5 : f32 to vector<8x128xf32>
    %10 = arith.subf %9, %1 : vector<8x128xf32>
    %11 = arith.mulf %8, %10 : vector<8x128xf32>
    %cst_6 = arith.constant 2.01874464E-8 : f32
    %12 = vector.broadcast %cst_6 : f32 to vector<8x128xf32>
    %13 = arith.mulf %12, %8 : vector<8x128xf32>
    %cst_7 = arith.constant 6.13195925E-6 : f32
    %14 = vector.broadcast %cst_7 : f32 to vector<8x128xf32>
    %15 = arith.addf %13, %14 : vector<8x128xf32>
    %16 = arith.mulf %15, %8 : vector<8x128xf32>
    %cst_8 = arith.constant -3.506420e-05 : f32
    %17 = vector.broadcast %cst_8 : f32 to vector<8x128xf32>
    %18 = arith.addf %16, %17 : vector<8x128xf32>
    %19 = arith.mulf %18, %8 : vector<8x128xf32>
    %cst_9 = arith.constant 7.41007488E-6 : f32
    %20 = vector.broadcast %cst_9 : f32 to vector<8x128xf32>
    %21 = arith.addf %19, %20 : vector<8x128xf32>
    %22 = arith.mulf %21, %8 : vector<8x128xf32>
    %cst_10 = arith.constant 3.43226158E-4 : f32
    %23 = vector.broadcast %cst_10 : f32 to vector<8x128xf32>
    %24 = arith.addf %22, %23 : vector<8x128xf32>
    %25 = arith.mulf %24, %8 : vector<8x128xf32>
    %cst_11 = arith.constant 1.37645043E-6 : f32
    %26 = vector.broadcast %cst_11 : f32 to vector<8x128xf32>
    %27 = arith.addf %25, %26 : vector<8x128xf32>
    %28 = arith.mulf %27, %8 : vector<8x128xf32>
    %cst_12 = arith.constant -0.00520862825 : f32
    %29 = vector.broadcast %cst_12 : f32 to vector<8x128xf32>
    %30 = arith.addf %28, %29 : vector<8x128xf32>
    %31 = arith.mulf %30, %8 : vector<8x128xf32>
    %cst_13 = arith.constant 3.68023123E-8 : f32
    %32 = vector.broadcast %cst_13 : f32 to vector<8x128xf32>
    %33 = arith.addf %31, %32 : vector<8x128xf32>
    %34 = arith.mulf %33, %8 : vector<8x128xf32>
    %cst_14 = arith.constant 1.250000e-01 : f32
    %35 = vector.broadcast %cst_14 : f32 to vector<8x128xf32>
    %36 = arith.addf %34, %35 : vector<8x128xf32>
    %37 = arith.mulf %36, %8 : vector<8x128xf32>
    %cst_15 = arith.constant -5.000000e-01 : f32
    %38 = vector.broadcast %cst_15 : f32 to vector<8x128xf32>
    %39 = arith.addf %37, %38 : vector<8x128xf32>
    %40 = arith.mulf %39, %8 : vector<8x128xf32>
    %cst_16 = arith.constant 0.693147182 : f32
    %41 = vector.broadcast %cst_16 : f32 to vector<8x128xf32>
    %42 = arith.addf %40, %41 : vector<8x128xf32>
    %43 = arith.addf %11, %42 : vector<8x128xf32>
    %c0_17 = arith.constant 0 : index
    %c0_18 = arith.constant 0 : index
    %44 = vector.load %arg3[%c0_17, %c0_18] : memref<8x128xf32, #tpu.memory_space<vmem>>, vector<8x128xf32>
    tpu.vector_store %arg3[%c0_17, %c0_18], %43 {strides = array<i32>} : memref<8x128xf32, #tpu.memory_space<vmem>>, vector<8x128xf32>,
    return
  }
  func.func @transform_0(%arg0: i32) -> (i32, i32) {
    %c0_i32 = arith.constant 0 : i32
    %c0_i32_0 = arith.constant 0 : i32
    return %arg0, %c0_i32 : i32, i32
  }
  func.func @transform_1(%arg0: i32) -> (i32, i32) {
    %c0_i32 = arith.constant 0 : i32
    %c0_i32_0 = arith.constant 0 : i32
    return %arg0, %c0_i32 : i32, i32
  }
  func.func @transform_2(%arg0: i32) -> (i32, i32) {
    %c0_i32 = arith.constant 0 : i32
    %c0_i32_0 = arith.constant 0 : i32
    return %arg0, %c0_i32 : i32, i32
  }
}

</mosaic_0001>

<llo_original>
// kernel: tpu_custom_call.1
$region0: #{tpu_custom_call.1}
  #allocation0 [shape = 'u32[]', space=smem, size = 0x4, offset = 0x4, fixed_abs, tag = 'smem constant byte address 0x4 - core index']
  #allocation1 [shape = 'u32[144,128]{1,0:T(1,128)}', space=vmem, size = 0x12000, scoped, tag = 'internal scratch']
  %s0 = inlined_call_operand.hbm [shape: f32[16,128], index: 0, kind: input, shape index: {}]
  %s1 = inlined_call_operand.hbm [shape: f32[16,128], index: 1, kind: input, shape index: {}]
  %s2 = inlined_call_operand.hbm [shape: f32[16,128], index: 2, kind: output, shape index: {}]
  %s3 = sld [smem:[#allocation0]]
  $region49: #{tpu_custom_call.1} parent=0
    _
  %s5 = ssub.s32 1, %s3
  %s6 = scalar_select 0, %s5, %s3
  $region1: #{tpu_custom_call.1} parent=0
    #allocation2 [shape = 'u8[8192]{0}', space=vmem, size = 0x2000, scoped, tag = 'input window, operand 0']
    #allocation3 [shape = 's32[2]{0}', space=sflag, size = 0x8, scoped, tag = 'scoped memory for tpu_custom_call.1']
    #allocation4 [shape = 's32[2]{0}', space=sflag, size = 0x8, scoped, tag = 'scoped memory for tpu_custom_call.1']
    #allocation5 [shape = 'u8[8192]{0}', space=vmem, size = 0x2000, scoped, tag = 'input window, operand 1']
    #allocation6 [shape = 's32[2]{0}', space=sflag, size = 0x8, scoped, tag = 'scoped memory for tpu_custom_call.1']
    #allocation7 [shape = 'u8[8192]{0}', space=vmem, size = 0x2000, scoped, tag = 'output window, operand 0']
    %7 = vsyncpa [#allocation3], 0
    %s8 = scalar_lea.sflag [#allocation3], 1
    %9 = vsyncpa %s8, 0
    %10 = vsyncpa [#allocation6], 0
    %s11 = scalar_lea.sflag [#allocation6], 1
    %12 = vsyncpa %s11, 0
    %13 = vsyncpa [#allocation4], 0
    %s14 = scalar_lea.sflag [#allocation4], 1
    %15 = vsyncpa %s14, 0
    loop: start=0, step=1, limit=4
    $region2: #{tpu_custom_call.1} parent=1 // loop_pre_header
      _
    $region3: #{tpu_custom_call.1} parent=1 // loop_header
      %s17 = sphi 0, %s21
      %p18 = scmp.ge.s32.totalorder %s17, 4
      %s27 = sphi 0, %s29
      %s30 = sphi 0, %s27
      %s31 = sphi 0, %s30
      %s47 = sphi 0, %s31
      %s53 = sphi 0, %s55
      %s56 = sphi 0, %s53
      %s57 = sphi 0, %s56
      %s73 = sphi 0, %s57
      %s79 = sphi 0, %s81
      %s82 = sphi 0, %s79
      %s83 = sphi 0, %s82
      %s99 = sphi 0, %s83
    $region4: #{tpu_custom_call.1} parent=1 // loop_header_branch
      %20 = sbr.rel (%p18) target = $region8
    $region5: #{tpu_custom_call.1} parent=1 // loop_body
      %s22 = ssub.s32 %s17, 1
      %s23 = ssub.s32 %s17, 2
      %s24 = sadd.s32 %s17, 1
      %s25 = ssub.s32 %s17, %s24
      %p26 = scmp.eq.s32.totalorder %s25, 0
      %s28 = sadd.s32 %s27, 1
      %s29 = scalar_select %p26, %s27, %s28
      %p32 = pneg %p26
      %p33 = scmp.eq.s32.totalorder %s17, 1
      %p34 = por %p32, %p33
      %p35 = scmp.ne.s32.totalorder %s27, %s30
      %p36 = scmp.eq.s32.totalorder %s17, 0
      %p37 = por %p35, %p36
      %p38 = scmp.ne.s32.totalorder %s27, %s30
      %p39 = scmp.eq.s32.totalorder %s22, 1
      %p40 = por %p38, %p39
      %p41 = scmp.ne.s32.totalorder %s30, %s31
      %p42 = scmp.eq.s32.totalorder %s22, 0
      %p43 = por %p41, %p42
      %p44 = scmp.ne.s32.totalorder %s30, %s31
      %p45 = scmp.eq.s32.totalorder %s23, 1
      %p46 = por %p44, %p45
      %p48 = scmp.ne.s32.totalorder %s31, %s47
      %p49 = scmp.eq.s32.totalorder %s23, 0
      %p50 = por %p48, %p49
      %s51 = ssub.s32 %s17, %s24
      %p52 = scmp.eq.s32.totalorder %s51, 0
      %s54 = sadd.s32 %s53, 1
      %s55 = scalar_select %p52, %s53, %s54
      %p58 = pneg %p52
      %p59 = scmp.eq.s32.totalorder %s17, 1
      %p60 = por %p58, %p59
      %p61 = scmp.ne.s32.totalorder %s53, %s56
      %p62 = scmp.eq.s32.totalorder %s17, 0
      %p63 = por %p61, %p62
      %p64 = scmp.ne.s32.totalorder %s53, %s56
      %p65 = scmp.eq.s32.totalorder %s22, 1
      %p66 = por %p64, %p65
      %p67 = scmp.ne.s32.totalorder %s56, %s57
      %p68 = scmp.eq.s32.totalorder %s22, 0
      %p69 = por %p67, %p68
      %p70 = scmp.ne.s32.totalorder %s56, %s57
      %p71 = scmp.eq.s32.totalorder %s23, 1
      %p72 = por %p70, %p71
      %p74 = scmp.ne.s32.totalorder %s57, %s73
      %p75 = scmp.eq.s32.totalorder %s23, 0
      %p76 = por %p74, %p75
      %s77 = ssub.s32 %s17, %s24
      %p78 = scmp.eq.s32.totalorder %s77, 0
      %s80 = sadd.s32 %s79, 1
      %s81 = scalar_select %p78, %s79, %s80
      %p84 = pneg %p78
      %p85 = scmp.eq.s32.totalorder %s17, 1
      %p86 = por %p84, %p85
      %p87 = scmp.ne.s32.totalorder %s79, %s82
      %p88 = scmp.eq.s32.totalorder %s17, 0
      %p89 = por %p87, %p88
      %p90 = scmp.ne.s32.totalorder %s79, %s82
      %p91 = scmp.eq.s32.totalorder %s22, 1
      %p92 = por %p90, %p91
      %p93 = scmp.ne.s32.totalorder %s82, %s83
      %p94 = scmp.eq.s32.totalorder %s22, 0
      %p95 = por %p93, %p94
      %p96 = scmp.ne.s32.totalorder %s82, %s83
      %p97 = scmp.eq.s32.totalorder %s23, 1
      %p98 = por %p96, %p97
      %p100 = scmp.ne.s32.totalorder %s83, %s99
      %p101 = scmp.eq.s32.totalorder %s23, 0
      %p102 = por %p100, %p101
      %p103 = scmp.le.s32.totalorder 1, %s17
      %p104 = scmp.lt.s32.totalorder %s17, 3
      %p105 = pnand %p103, %p104
      %p106 = pneg %p105
      // Predicated region
      $region9: #{tpu_custom_call.1} parent=5 // pred_check
        _
      $region10: #{tpu_custom_call.1} parent=5 // pred_check_branch
        %108 = sbr.rel (%p105) target = $region12
      $region11: #{tpu_custom_call.1} parent=5 // pred_region
        %s109 = ssub.s32 %s17, 1
      $region12: #{tpu_custom_call.1} parent=5 // pred_fallthru
        _
      %p110 = scmp.lt.s32.totalorder %s17, 2
      // Predicated region
      $region13: #{tpu_custom_call.1} parent=5 // pred_check
        %p111 = pneg %p110
      $region14: #{tpu_custom_call.1} parent=5 // pred_check_branch
        %113 = sbr.rel (%p111) target = $region16
      $region15: #{tpu_custom_call.1} parent=5 // pred_region
        // Predicated region
        $region17: #{tpu_custom_call.1} parent=15 // pred_check
          %p114 = pneg %p37
        $region18: #{tpu_custom_call.1} parent=15 // pred_check_branch
          %116 = sbr.rel (%p114) target = $region20
        $region19: #{tpu_custom_call.1} parent=15 // pred_region
          %s117 = sand.u32 %s27, 1
          %s118 = scalar_lea.sflag [#allocation3], %s117
          %s119 = sand.u32 %s27, 1
          %s120 = smul.addr %s119, 8
          %s121 = scalar_lea.vmem [#allocation2], %s120
          %s123 = ssub.s32 128, 128
          %124 = vsyncadd %s118, %s123
          %s125 = smul.addr %s17, 128
          %s126 = scalar_lea.hbm %s0, %s125
          %s128 = sshll.u32 %s121, 4
          %s129 = int_to_ptr.vmem [resolvable:$true] %s128
          %131 = dma.hbm_to_vmem [thread:$0]  %s126, 128, %s129, %s118
        $region20: #{tpu_custom_call.1} parent=15 // pred_fallthru
          _
        // Predicated region
        $region21: #{tpu_custom_call.1} parent=15 // pred_check
          %p132 = pneg %p63
        $region22: #{tpu_custom_call.1} parent=15 // pred_check_branch
          %134 = sbr.rel (%p132) target = $region24
        $region23: #{tpu_custom_call.1} parent=15 // pred_region
          %s135 = sand.u32 %s53, 1
          %s136 = scalar_lea.sflag [#allocation6], %s135
          %s137 = sand.u32 %s53, 1
          %s138 = smul.addr %s137, 8
          %s139 = scalar_lea.vmem [#allocation5], %s138
          %s141 = ssub.s32 128, 128
          %142 = vsyncadd %s136, %s141
          %s143 = smul.addr %s17, 128
          %s144 = scalar_lea.hbm %s1, %s143
          %s146 = sshll.u32 %s139, 4
          %s147 = int_to_ptr.vmem [resolvable:$true] %s146
          %149 = dma.hbm_to_vmem [thread:$0]  %s144, 128, %s147, %s136
        $region24: #{tpu_custom_call.1} parent=15 // pred_fallthru
          _
      $region16: #{tpu_custom_call.1} parent=5 // pred_fallthru
        _
      %p150 = scmp.le.s32.totalorder 1, %s17
      %p151 = scmp.lt.s32.totalorder %s17, 3
      %p152 = pnand %p150, %p151
      %p153 = pneg %p152
      // Predicated region
      $region25: #{tpu_custom_call.1} parent=5 // pred_check
        _
      $region26: #{tpu_custom_call.1} parent=5 // pred_check_branch
        %155 = sbr.rel (%p152) target = $region28
      $region27: #{tpu_custom_call.1} parent=5 // pred_region
        %s156 = ssub.s32 %s17, 1
        %s157 = sand.u32 %s30, 1
        %s158 = scalar_lea.sflag [#allocation3], %s157
        %s159 = sand.u32 %s30, 1
        %s160 = smul.addr %s159, 8
        %s161 = scalar_lea.vmem [#allocation2], %s160
        // Predicated region
        $region29: #{tpu_custom_call.1} parent=27 // pred_check
          %p162 = pneg %p43
        $region30: #{tpu_custom_call.1} parent=27 // pred_check_branch
          %164 = sbr.rel (%p162) target = $region32
        $region31: #{tpu_custom_call.1} parent=27 // pred_region
          %165 = dma.done %s158, 128
        $region32: #{tpu_custom_call.1} parent=27 // pred_fallthru
          _
        %s166 = sand.u32 %s56, 1
        %s167 = scalar_lea.sflag [#allocation6], %s166
        %s168 = sand.u32 %s56, 1
        %s169 = smul.addr %s168, 8
        %s170 = scalar_lea.vmem [#allocation5], %s169
        // Predicated region
        $region33: #{tpu_custom_call.1} parent=27 // pred_check
          %p171 = pneg %p69
        $region34: #{tpu_custom_call.1} parent=27 // pred_check_branch
          %173 = sbr.rel (%p171) target = $region36
        $region35: #{tpu_custom_call.1} parent=27 // pred_region
          %174 = dma.done %s167, 128
        $region36: #{tpu_custom_call.1} parent=27 // pred_fallthru
          _
        %s175 = sand.u32 %s30, 1
        %s176 = scalar_lea.sflag [#allocation3], %s175
        %s177 = sand.u32 %s30, 1
        %s178 = smul.addr %s177, 8
        %s179 = scalar_lea.vmem [#allocation2], %s178
        %p180 = pneg %p43
        %p181 = pneg %p40
        %s182 = sand.u32 %s56, 1
        %s183 = scalar_lea.sflag [#allocation6], %s182
        %s184 = sand.u32 %s56, 1
        %s185 = smul.addr %s184, 8
        %s186 = scalar_lea.vmem [#allocation5], %s185
        %p187 = pneg %p69
        %p188 = pneg %p66
        %p189 = pneg %p95
        %p190 = pneg %p92
        %s191 = sand.u32 %s82, 1
        %s192 = scalar_lea.sflag [#allocation4], %s191
        %s193 = sand.u32 %s82, 1
        %s194 = smul.addr %s193, 8
        %s195 = scalar_lea.vmem [#allocation7], %s194
        %v196 = vld [vmem:[%s161] sm:$0xff]
        %v197 = vld [vmem:[%s170] sm:$0xff]
        %v198 = vmul.f32 %v196, 0.5
        %v199 = vtanh.pop %v198
        %v200 = vadd.f32 %v199, 1.0
        %v201 = vmul.f32 %v200, 0.5
        %v202 = vsub.f32 1.0, %v197
        %v203 = vmul.f32 %v201, %v202
        %v204 = vmul.f32 %v201, 2.0187446e-08
        %v205 = vadd.f32 %v204, 6.1319593e-06
        %v206 = vmul.f32 %v205, %v201
        %v207 = vadd.f32 %v206, -3.50642e-05
        %v208 = vmul.f32 %v207, %v201
        %v209 = vadd.f32 %v208, 7.410075e-06
        %v210 = vmul.f32 %v209, %v201
        %v211 = vadd.f32 %v210, 0.00034322616
        %v212 = vmul.f32 %v211, %v201
        %v213 = vadd.f32 %v212, 1.3764504e-06
        %v214 = vmul.f32 %v213, %v201
        %v215 = vadd.f32 %v214, -0.0052086283
        %v216 = vmul.f32 %v215, %v201
        %v217 = vadd.f32 %v216, 3.6802312e-08
        %v218 = vmul.f32 %v217, %v201
        %v219 = vadd.f32 %v218, 0.125
        %v220 = vmul.f32 %v219, %v201
        %v221 = vadd.f32 %v220, -0.5
        %v222 = vmul.f32 %v221, %v201
        %v223 = vadd.f32 %v222, 0.6931472
        %v224 = vadd.f32 %v203, %v223
        %225 = vst [vmem:[%s195] sm:$0xff] %v224
        %s226 = sand.u32 %s82, 1
        %s227 = scalar_lea.sflag [#allocation4], %s226
        %s228 = sand.u32 %s82, 1
        %s229 = smul.addr %s228, 8
        %s230 = scalar_lea.vmem [#allocation7], %s229
        // Predicated region
        $region37: #{tpu_custom_call.1} parent=27 // pred_check
          %p231 = pneg %p92
        $region38: #{tpu_custom_call.1} parent=27 // pred_check_branch
          %233 = sbr.rel (%p231) target = $region40
        $region39: #{tpu_custom_call.1} parent=27 // pred_region
          %s235 = ssub.s32 128, 128
          %236 = vsyncadd %s227, %s235
          %s237 = smul.addr %s22, 128
          %s238 = scalar_lea.hbm %s2, %s237
          %s240 = sshll.u32 %s230, 4
          %s241 = int_to_ptr.vmem [resolvable:$true] %s240
          %243 = dma.vmem_to_hbm [thread:$0]  %s241, 128, %s238, %s227
        $region40: #{tpu_custom_call.1} parent=27 // pred_fallthru
          _
      $region28: #{tpu_custom_call.1} parent=5 // pred_fallthru
        _
      %p244 = scmp.le.s32.totalorder 2, %s17
      // Predicated region
      $region41: #{tpu_custom_call.1} parent=5 // pred_check
        %p245 = pneg %p244
      $region42: #{tpu_custom_call.1} parent=5 // pred_check_branch
        %247 = sbr.rel (%p245) target = $region44
      $region43: #{tpu_custom_call.1} parent=5 // pred_region
        %s248 = ssub.s32 %s17, 2
        // Predicated region
        $region45: #{tpu_custom_call.1} parent=43 // pred_check
          %p249 = pneg %p98
        $region46: #{tpu_custom_call.1} parent=43 // pred_check_branch
          %251 = sbr.rel (%p249) target = $region48
        $region47: #{tpu_custom_call.1} parent=43 // pred_region
          %s252 = sand.u32 %s83, 1
          %s253 = scalar_lea.sflag [#allocation4], %s252
          %s254 = sand.u32 %s83, 1
          %s255 = smul.addr %s254, 8
          %s256 = scalar_lea.vmem [#allocation7], %s255
          %257 = dma.done %s253, 128
        $region48: #{tpu_custom_call.1} parent=43 // pred_fallthru
          _
      $region44: #{tpu_custom_call.1} parent=5 // pred_fallthru
        _
    $region6: #{tpu_custom_call.1} parent=1 // loop_footer
      %s21 = sadd.s32 1, %s17
    $region7: #{tpu_custom_call.1} parent=1 // loop_footer_branch
      %16 = sbr.rel target = $region3
    $region8: #{tpu_custom_call.1} parent=1 // loop_exit
      _
    %258 = vsyncpa [#allocation3], 1
    %s259 = scalar_lea.sflag [#allocation3], 1
    %260 = vsyncpa %s259, 1
    %261 = vsyncpa [#allocation6], 1
    %s262 = scalar_lea.sflag [#allocation6], 1
    %263 = vsyncpa %s262, 1
    %264 = vsyncpa [#allocation4], 1
    %s265 = scalar_lea.sflag [#allocation4], 1
    %266 = vsyncpa %s265, 1

</llo_original>
